<compile_context>
chip_gen: v7x
topology: tpu7x:2x2x1
jax: 0.10.0
libtpu: 0.0.40
codegen_flags: <defaults>
</compile_context>

<pallas_src>
import functools
import numpy as np
import jax
import jax.numpy as jnp
from jax import lax
from jax.experimental import pallas as pl
from jax.experimental.pallas import tpu as pltpu

_VMEM_LIMIT = 32 * 1024 * 1024  # explicit scoped-VMEM limit, safe on v5e/v6e/v7x


def _params(grid_len):
    return pltpu.CompilerParams(
        dimension_semantics=("parallel",) * grid_len,
        vmem_limit_bytes=_VMEM_LIMIT,
    )


def _pick_lane_tile(L, target=512):
    """Largest multiple of 128 <= target that divides L; else the full L."""
    if L % 128 != 0 or L <= 128:
        return L
    t = min(target, L)
    t -= t % 128
    while t > 128 and L % t != 0:
        t -= 128
    return t


def _uniform(key, shape, bound):
    return jax.random.uniform(key, shape, jnp.float32, -bound, bound)


# ----------------------------------------------------------------------------
# Generic "channel matmul" kernel:  (R, Cin) @ (Cin, HW_tile) + bias.
# Used for ConvTranspose2d(k=2, s=2) and the 1x1 score conv.
# ----------------------------------------------------------------------------
def _channel_matmul_kernel(x_ref, w_ref, b_ref, o_ref):
    # x_ref: (1, Cin, T)   w_ref: (R, Cin)   b_ref: (R, 1)   o_ref: (1, R, T)
    acc = jnp.dot(w_ref[...], x_ref[0], preferred_element_type=jnp.float32)
    o_ref[0] = (acc + b_ref[...].astype(jnp.float32)).astype(o_ref.dtype)


def _channel_matmul(x, w2, b1):
    """x: (N, Cin, H, W); w2: (R, Cin); b1: (R,).  Returns (N, R, H*W)."""
    N, Cin, H, W = x.shape
    R = w2.shape[0]
    HW = H * W
    x3 = x.reshape(N, Cin, HW)          # free in NCHW — no host transpose
    b2 = b1.reshape(R, 1)
    t = _pick_lane_tile(HW)
    grid = (N, HW // t)
    return pl.pallas_call(
        _channel_matmul_kernel,
        out_shape=jax.ShapeDtypeStruct((N, R, HW), x.dtype),
        grid=grid,
        in_specs=[
            pl.BlockSpec((1, Cin, t), lambda n, j: (n, 0, j)),
            pl.BlockSpec((R, Cin), lambda n, j: (0, 0)),
            pl.BlockSpec((R, 1), lambda n, j: (0, 0)),
        ],
        out_specs=pl.BlockSpec((1, R, t), lambda n, j: (n, 0, j)),
        compiler_params=_params(2),
    )(x3, w2, b2)


def conv_transpose_2x2_stride2(x, weight, bias):
    """x: (N, Cin, H, W); weight: (Cin, Cout, 2, 2) (PyTorch layout); bias: (Cout,)."""
    N, Cin, H, W = x.shape
    Cout = weight.shape[1]
    w2 = weight.transpose(1, 2, 3, 0).reshape(Cout * 4, Cin)   # row = co*4 + kh*2 + kw
    b2 = jnp.repeat(bias, 4)
    out3 = _channel_matmul(x, w2, b2)                          # (N, Cout*4, H*W)
    # 2x2 pixel interleave stays as one XLA reshape/transpose (an in-kernel
    # scatter would need lane-strided stores).
    out = out3.reshape(N, Cout, 2, 2, H, W).transpose(0, 1, 4, 2, 5, 3)
    return out.reshape(N, Cout, 2 * H, 2 * W)


def conv2d_1x1(x, weight, bias):
    """x: (N, Cin, H, W); weight: (Cout, Cin, 1, 1); bias: (Cout,)."""
    N, Cin, H, W = x.shape
    Cout = weight.shape[0]
    out3 = _channel_matmul(x, weight.reshape(Cout, Cin), bias)
    return out3.reshape(N, Cout, H, W)


# ----------------------------------------------------------------------------
# Fused Conv2d(3x3, SAME, bias) + InstanceNorm2d + LeakyReLU(0.01).
# Input arrives flat-padded along H*W so every tap is a contiguous lane slice.
# ----------------------------------------------------------------------------
def _conv3x3_in_lrelu_kernel(x_ref, w_ref, b_ref, o_ref, *, H, W, eps, slope):
    # x_ref: (1, Cin, HW + 2W + 2)   w_ref: (9, Cout, Cin)
    # b_ref: (Cout, 1)               o_ref: (1, Cout, HW)
    HW = H * W
    Cout = o_ref.shape[1]
    xp = x_ref[0]                                           # (Cin, HWp)
    col = lax.broadcasted_iota(jnp.int32, (1, HW), 1) % W   # flat pos -> column
    acc = jnp.zeros((Cout, HW), jnp.float32)
    for kh in range(3):
        for kw in range(3):
            dh, dw = kh - 1, kw - 1
            off = (W + 1) + dh * W + dw
            xs = xp[:, off:off + HW]                        # shifted window
            if dw != 0:
                valid = (col + dw >= 0) & (col + dw < W)    # mask row-wrap reads
                xs = jnp.where(valid, xs, 0.0)
            acc = acc + jnp.dot(w_ref[kh * 3 + kw], xs,
                                preferred_element_type=jnp.float32)
    acc = acc + b_ref[...].astype(jnp.float32)
    # InstanceNorm2d (affine=False, biased variance) fused in VMEM.
    mean = jnp.mean(acc, axis=1, keepdims=True)
    var = jnp.mean(jnp.square(acc - mean), axis=1, keepdims=True)
    y = (acc - mean) * lax.rsqrt(var + eps)
    o_ref[0] = jnp.where(y >= 0, y, slope * y).astype(o_ref.dtype)


def conv3x3_instnorm_lrelu(x, weight, bias, *, eps=1e-5, slope=0.01):
    """x: (N, Cin, H, W); weight: (Cout, Cin, 3, 3); bias: (Cout,)."""
    N, Cin, H, W = x.shape
    Cout = weight.shape[0]
    HW = H * W
    HWp = HW + 2 * W + 2
    x3p = jnp.pad(x.reshape(N, Cin, HW), ((0, 0), (0, 0), (W + 1, W + 1)))
    w9 = weight.transpose(2, 3, 0, 1).reshape(9, Cout, Cin)
    b2 = bias.reshape(Cout, 1)
    kernel = functools.partial(_conv3x3_in_lrelu_kernel, H=H, W=W, eps=eps,
                               slope=slope)
    out3 = pl.pallas_call(
        kernel,
        out_shape=jax.ShapeDtypeStruct((N, Cout, HW), x.dtype),
        grid=(N,),
        in_specs=[
            pl.BlockSpec((1, Cin, HWp), lambda n: (n, 0, 0)),
            pl.BlockSpec((9, Cout, Cin), lambda n: (0, 0, 0)),
            pl.BlockSpec((Cout, 1), lambda n: (0, 0)),
        ],
        out_specs=pl.BlockSpec((1, Cout, HW), lambda n: (n, 0, 0)),
        compiler_params=_params(1),
    )(x3p, w9, b2)
    return out3.reshape(N, Cout, H, W)


# ----------------------------------------------------------------------------
# Bilinear x2 upsample (align_corners=True) — batched, flattened MXU matmuls.
# ----------------------------------------------------------------------------
@functools.lru_cache(maxsize=None)
def _bilinear_matrix(in_size, out_size):
    """(out_size, in_size) interpolation matrix, align_corners=True (cached)."""
    A = np.zeros((out_size, in_size), dtype=np.float32)
    if in_size == 1 or out_size == 1:
        A[:, 0] = 1.0
    else:
        scale = (in_size - 1) / (out_size - 1)
        for o in range(out_size):
            src = o * scale
            lo = min(int(np.floor(src)), in_size - 2)
            frac = src - lo
            A[o, lo] += 1.0 - frac
            A[o, lo + 1] += frac
    return jnp.asarray(A)


def _bilinear_kernel(x_ref, awt_ref, ah_ref, o_ref):
    # x_ref: (TB, H, W)  awt_ref: (W, OW)  ah_ref: (OH, H)  o_ref: (TB, OH, OW)
    TB, H, W = x_ref.shape
    OH, OW = ah_ref.shape[0], awt_ref.shape[1]
    # W-contraction as one flattened MXU matmul (M = TB*H).
    t = jnp.dot(x_ref[...].reshape(TB * H, W), awt_ref[...],
                preferred_element_type=jnp.float32)          # (TB*H, OW)
    t3 = t.reshape(TB, H, OW)
    # H-contraction as a batched matmul.
    ah = jnp.broadcast_to(ah_ref[...].astype(jnp.float32), (TB, OH, H))
    y = jnp.einsum("boh,bhw->bow", ah, t3, preferred_element_type=jnp.float32)
    o_ref[...] = y.astype(o_ref.dtype)


def _pick_batch_tile(nc, h, w):
    per_img_bytes = 5 * h * w * 4 * 4          # in + out (+f32 temps), dbl-buffered
    cap = max(1, min(64, (4 * 1024 * 1024) // max(per_img_bytes, 1)))
    if nc >= 2:
        cap = min(cap, nc // 2)                # keep grid >= 2 (megacore)
    cap = max(1, min(cap, nc))
    for tb in range(cap, 0, -1):
        if nc % tb == 0:
            return tb
    return 1


def bilinear_upsample_x2(x):
    """x: (N, C, H, W) -> (N, C, 2H, 2W), bilinear, align_corners=True."""
    N, C, H, W = x.shape
    OH, OW = 2 * H, 2 * W
    ah = _bilinear_matrix(H, OH)               # (OH, H)
    awt = _bilinear_matrix(W, OW).T            # (W, OW)
    NC = N * C
    TB = _pick_batch_tile(NC, H, W)
    xb = x.reshape(NC, H, W)
    out = pl.pallas_call(
        _bilinear_kernel,
        out_shape=jax.ShapeDtypeStruct((NC, OH, OW), x.dtype),
        grid=(NC // TB,),
        in_specs=[
            pl.BlockSpec((TB, H, W), lambda b: (b, 0, 0)),
            pl.BlockSpec((W, OW), lambda b: (0, 0)),
            pl.BlockSpec((OH, H), lambda b: (0, 0)),
        ],
        out_specs=pl.BlockSpec((TB, OH, OW), lambda b: (b, 0, 0)),
        compiler_params=_params(1),
    )(xb, awt, ah)
    return out.reshape(N, C, OH, OW)


# ----------------------------------------------------------------------------
# Module wrappers mirroring net/BasicBlock.py.
# ----------------------------------------------------------------------------
class UNetUpSamplingBlock:
    def __init__(self, in_channels, out_channels, deconv=False, bias=True, key=None):
        self.deconv = deconv
        if deconv:
            if key is None:
                key = jax.random.PRNGKey(0)
            kw_, kb_ = jax.random.split(key)
            bound = 1.0 / np.sqrt(in_channels * 4)
            self.weight = _uniform(kw_, (in_channels, out_channels, 2, 2), bound)
            self.bias = (_uniform(kb_, (out_channels,), bound) if bias
                         else jnp.zeros((out_channels,), jnp.float32))

    def up(self, x):
        if self.deconv:
            return conv_transpose_2x2_stride2(x, self.weight, self.bias)
        return bilinear_upsample_x2(x)

    def __call__(self, *inputs):
        if len(inputs) == 2:
            return self.forward_concat(inputs[0], inputs[1])
        return self.forward_standard(inputs[0])

    def forward_concat(self, inputs1, inputs2):
        return jnp.concatenate([inputs1, self.up(inputs2)], axis=1)

    def forward_standard(self, inputs):
        return self.up(inputs)


class ConvNormRelu:
    def __init__(self, in_channels, out_channels, key, kernel_size=3,
                 norm_type='instance', bias=True):
        if kernel_size != 3 or norm_type != 'instance':
            raise NotImplementedError(
                "only kernel_size=3 / norm_type='instance' (UNetDecoder config)")
        kw_, kb_ = jax.random.split(key)
        bound = 1.0 / np.sqrt(in_channels * 9)
        self.weight = _uniform(kw_, (out_channels, in_channels, 3, 3), bound)
        self.bias = (_uniform(kb_, (out_channels,), bound) if bias
                     else jnp.zeros((out_channels,), jnp.float32))

    def __call__(self, x):
        return conv3x3_instnorm_lrelu(x, self.weight, self.bias)


class UNetConvBlock:
    def __init__(self, in_channels, out_channels, key, norm_type='instance', bias=True):
        k1, k2 = jax.random.split(key)
        self.conv1 = ConvNormRelu(in_channels, out_channels, k1,
                                  norm_type=norm_type, bias=bias)
        self.conv2 = ConvNormRelu(out_channels, out_channels, k2,
                                  norm_type=norm_type, bias=bias)

    def __call__(self, x):
        return self.conv2(self.conv1(x))


class UNetDecoder:
    def __init__(self, out_channels, feature_maps=64, levels=4, norm_type='instance',
                 bias=True, wskip=True, key=None):
        if key is None:
            key = jax.random.PRNGKey(0)
        self.out_channels = out_channels
        self.feature_maps = feature_maps
        self.levels = levels
        self.wskip = wskip
        self.upconvs = []
        self.convblocks = []
        keys = jax.random.split(key, 2 * levels + 1)
        for i in range(levels):
            cin = 2 ** (levels - i) * feature_maps
            cout = 2 ** (levels - i - 1) * feature_maps
            self.upconvs.append(UNetUpSamplingBlock(cin, cout, deconv=True,
                                                    bias=bias, key=keys[2 * i]))
            blk_in = cin if wskip else cout
            self.convblocks.append(UNetConvBlock(blk_in, cout, keys[2 * i + 1],
                                                 norm_type=norm_type, bias=bias))
        kw_, kb_ = jax.random.split(keys[-1])
        bound = 1.0 / np.sqrt(feature_maps)
        self.score_weight = _uniform(kw_, (out_channels, feature_maps, 1, 1), bound)
        self.score_bias = (_uniform(kb_, (out_channels,), bound) if bias
                           else jnp.zeros((out_channels,), jnp.float32))

    def __call__(self, inputs, encoder_outputs):
        enc = list(encoder_outputs)[::-1]   # same net effect as reverse()/reverse()
        decoder_outputs = []
        outputs = inputs
        for i in range(self.levels):
            if self.wskip:
                outputs = self.upconvs[i](enc[i], outputs)
            else:
                outputs = self.upconvs[i](outputs)
            outputs = self.convblocks[i](outputs)
            decoder_outputs.append(outputs)
        score = conv2d_1x1(outputs, self.score_weight, self.score_bias)
        return decoder_outputs, score


# ----------------------------------------------------------------------------
# Pure-JAX references for correctness checks.
# ----------------------------------------------------------------------------
def _ref_deconv(x, weight, bias):
    N, Cin, H, W = x.shape
    Cout = weight.shape[1]
    t = jnp.einsum("nihw,iokl->nohkwl", x, weight, precision=lax.Precision.HIGHEST)
    return t.reshape(N, Cout, 2 * H, 2 * W) + bias[None, :, None, None]


def _ref_convnormrelu(x, weight, bias, eps=1e-5, slope=0.01):
    y = lax.conv_general_dilated(x, weight, (1, 1), ((1, 1), (1, 1)),
                                 dimension_numbers=("NCHW", "OIHW", "NCHW"),
                                 precision=lax.Precision.HIGHEST)
    y = y + bias[None, :, None, None]
    mean = y.mean(axis=(2, 3), keepdims=True)
    var = jnp.square(y - mean).mean(axis=(2, 3), keepdims=True)
    y = (y - mean) * lax.rsqrt(var + eps)
    return jnp.where(y >= 0, y, slope * y)


def _ref_bilinear(x):
    N, C, H, W = x.shape
    ah = _bilinear_matrix(H, 2 * H)
    aw = _bilinear_matrix(W, 2 * W)
    return jnp.einsum("oh,nchw,qw->ncoq", ah, x, aw, precision=lax.Precision.HIGHEST)


def _ref_decoder(dec, inputs, encoder_outputs):
    enc = list(encoder_outputs)[::-1]
    outs = []
    x = inputs
    for i in range(dec.levels):
        up = _ref_deconv(x, dec.upconvs[i].weight, dec.upconvs[i].bias)
        x = jnp.concatenate([enc[i], up], axis=1) if dec.wskip else up
        x = _ref_convnormrelu(x, dec.convblocks[i].conv1.weight, dec.convblocks[i].conv1.bias)
        x = _ref_convnormrelu(x, dec.convblocks[i].conv2.weight, dec.convblocks[i].conv2.bias)
        outs.append(x)
    score = jnp.einsum("nchw,oc->nohw", x, dec.score_weight[:, :, 0, 0],
                       precision=lax.Precision.HIGHEST) + dec.score_bias[None, :, None, None]
    return outs, score


if __name__ == "__main__":
    key = jax.random.PRNGKey(0)
    k_in, k_e1, k_e2, k_dec, k_bl = jax.random.split(key, 5)

    # UNetDecoder: out_channels=3, feature_maps=8, levels=2, bottleneck 8x8.
    N, fm, levels, out_ch = 2, 8, 2, 3
    Hb = Wb = 8
    inputs = jax.random.normal(k_in, (N, (2 ** levels) * fm, Hb, Wb), jnp.float32)
    # encoder outputs, shallow -> deep (the forward reverses them)
    encoder_outputs = [
        jax.random.normal(k_e1, (N, fm, 4 * Hb, 4 * Wb), jnp.float32),
        jax.random.normal(k_e2, (N, 2 * fm, 2 * Hb, 2 * Wb), jnp.float32),
    ]

    dec = UNetDecoder(out_ch, feature_maps=fm, levels=levels, wskip=True, key=k_dec)
    dec_outs, score = dec(inputs, encoder_outputs)
    jax.block_until_ready((dec_outs, score))

    assert len(dec_outs) == levels
    assert dec_outs[0].shape == (N, 2 * fm, 2 * Hb, 2 * Wb)
    assert dec_outs[1].shape == (N, fm, 4 * Hb, 4 * Wb)
    assert score.shape == (N, out_ch, 4 * Hb, 4 * Wb)

    ref_outs, ref_score = _ref_decoder(dec, inputs, encoder_outputs)
    for got, want in zip(dec_outs, ref_outs):
        np.testing.assert_allclose(np.asarray(got), np.asarray(want),
                                   rtol=1e-3, atol=1e-3)
    np.testing.assert_allclose(np.asarray(score), np.asarray(ref_score),
                               rtol=1e-3, atol=1e-3)

    # UNetUpSamplingBlock, bilinear (deconv=False) path: standard + concat.
    xb = jax.random.normal(k_bl, (2, 4, 16, 16), jnp.float32)
    skip = jax.random.normal(k_e1, (2, 6, 32, 32), jnp.float32)
    blk = UNetUpSamplingBlock(4, 4, deconv=False)
    y_std = blk(xb)
    y_cat = blk(skip, xb)
    jax.block_until_ready((y_std, y_cat))
    assert y_std.shape == (2, 4, 32, 32) and y_cat.shape == (2, 10, 32, 32)
    np.testing.assert_allclose(np.asarray(y_std), np.asarray(_ref_bilinear(xb)),
                               rtol=1e-4, atol=1e-4)
    np.testing.assert_allclose(
        np.asarray(y_cat),
        np.asarray(jnp.concatenate([skip, _ref_bilinear(xb)], axis=1)),
        rtol=1e-4, atol=1e-4)

    print("KERNEL_OK")
</pallas_src>

<mosaic_0001>
module attributes {stable_mosaic.version = 11 : i64} {
  func.func @_channel_matmul_kernel(%arg0: i32, %arg1: i32, %arg2: memref<1x32x64xf32, #tpu.memory_space<vmem>>, %arg3: memref<64x32xf32, #tpu.memory_space<vmem>>, %arg4: memref<64x1xf32, #tpu.memory_space<vmem>>, %arg5: memref<1x64x64xf32, #tpu.memory_space<vmem>>) attributes {dimension_semantics = [#tpu.dimension_semantics<parallel>, #tpu.dimension_semantics<parallel>], iteration_bounds = array<i64: 2, 1>, scalar_prefetch = 0 : i64, scratch_operands = 0 : i64, tpu.core_type = #tpu.core_type<tc>, window_params = [{transform_indices = @transform_0, window_bounds = array<i64: 1, 32, 64>}, {pipeline_mode = #tpu.pipeline_mode<synchronous>, transform_indices = @transform_1, window_bounds = array<i64: 64, 32>}, {pipeline_mode = #tpu.pipeline_mode<synchronous>, transform_indices = @transform_2, window_bounds = array<i64: 64, 1>}, {transform_indices = @transform_3, window_bounds = array<i64: 1, 64, 64>}]} {
    %c0 = arith.constant 0 : index
    %c0_0 = arith.constant 0 : index
    %0 = vector.load %arg3[%c0, %c0_0] : memref<64x32xf32, #tpu.memory_space<vmem>>, vector<64x32xf32>
    %c0_1 = arith.constant 0 : index
    %c0_2 = arith.constant 0 : index
    %c0_3 = arith.constant 0 : index
    %1 = vector.load %arg2[%c0_1, %c0_2, %c0_3] : memref<1x32x64xf32, #tpu.memory_space<vmem>>, vector<1x32x64xf32>
    %2 = vector.shape_cast %1 : vector<1x32x64xf32> to vector<32x64xf32>
    %cst = arith.constant dense<0.000000e+00> : vector<64x64xf32>
    %3 = tpu.matmul %0, %2, %cst {dimension_numbers = #tpu.dot_dimension_numbers<[1], [0], [0], [1], [0, 0, 1, 1], [], []>} : vector<64x32xf32>, vector<32x64xf32>, vector<64x64xf32> -> vector<64x64xf32>
    %c0_4 = arith.constant 0 : index
    %c0_5 = arith.constant 0 : index
    %4 = vector.load %arg4[%c0_4, %c0_5] : memref<64x1xf32, #tpu.memory_space<vmem>>, vector<64x1xf32>
    %5 = vector.broadcast %4 : vector<64x1xf32> to vector<64x64xf32>
    %6 = arith.addf %3, %5 : vector<64x64xf32>
    %c0_6 = arith.constant 0 : index
    %c0_7 = arith.constant 0 : index
    %c0_8 = arith.constant 0 : index
    %7 = vector.load %arg5[%c0_6, %c0_7, %c0_8] : memref<1x64x64xf32, #tpu.memory_space<vmem>>, vector<1x64x64xf32>
    %8 = vector.shape_cast %7 : vector<1x64x64xf32> to vector<64x64xf32>
    %9 = vector.shape_cast %6 : vector<64x64xf32> to vector<1x64x64xf32>
    tpu.vector_store %arg5[%c0_6, %c0_7, %c0_8], %9 {strides = array<i32>} : memref<1x64x64xf32, #tpu.memory_space<vmem>>, vector<1x64x64xf32>,
    return
  }
  func.func @transform_0(%arg0: i32, %arg1: i32) -> (i32, i32, i32) {
    %c0_i32 = arith.constant 0 : i32
    %c0_i32_0 = arith.constant 0 : i32
    return %arg0, %c0_i32, %arg1 : i32, i32, i32
  }
  func.func @transform_1(%arg0: i32, %arg1: i32) -> (i32, i32) {
    %c0_i32 = arith.constant 0 : i32
    %c0_i32_0 = arith.constant 0 : i32
    %c0_i32_1 = arith.constant 0 : i32
    return %c0_i32, %c0_i32_0 : i32, i32
  }
  func.func @transform_2(%arg0: i32, %arg1: i32) -> (i32, i32) {
    %c0_i32 = arith.constant 0 : i32
    %c0_i32_0 = arith.constant 0 : i32
    %c0_i32_1 = arith.constant 0 : i32
    return %c0_i32, %c0_i32_0 : i32, i32
  }
  func.func @transform_3(%arg0: i32, %arg1: i32) -> (i32, i32, i32) {
    %c0_i32 = arith.constant 0 : i32
    %c0_i32_0 = arith.constant 0 : i32
    return %arg0, %c0_i32, %arg1 : i32, i32, i32
  }
}

</mosaic_0001>

<llo_original>
// kernel: tpu_custom_call.1
$region0: #{tpu_custom_call.1}
  #allocation0 [shape = 'u32[]', space=smem, size = 0x4, offset = 0x4, fixed_abs, tag = 'smem constant byte address 0x4 - core index']
  #allocation1 [shape = 'u32[144,128]{1,0:T(1,128)}', space=vmem, size = 0x12000, scoped, tag = 'internal scratch']
  %s0 = inlined_call_operand.vmem [shape: f32[2,32,64], index: 0, kind: input, shape index: {}]
  %s1 = inlined_call_operand.vmem [shape: f32[64,32], index: 1, kind: input, shape index: {}]
  %s2 = inlined_call_operand.vmem [shape: f32[64,1], index: 2, kind: input, shape index: {}]
  %s3 = inlined_call_operand.hbm [shape: f32[2,64,64], index: 3, kind: output, shape index: {}]
  %s4 = sld [smem:[#allocation0]]
  $region45: #{tpu_custom_call.1} parent=0
    _
  %s6 = ssub.s32 1, %s4
  %s7 = scalar_select 0, %s6, %s4
  $region1: #{tpu_custom_call.1} parent=0
    #allocation2 [shape = 'u8[65536]{0}', space=vmem, size = 0x10000, scoped, tag = 'output window, operand 0']
    #allocation3 [shape = 's32[2]{0}', space=sflag, size = 0x8, scoped, tag = 'scoped memory for tpu_custom_call.1']
    %8 = vsyncpa [#allocation3], 0
    %s9 = scalar_lea.sflag [#allocation3], 1
    %10 = vsyncpa %s9, 0
    loop: start=0, step=1, limit=4
    $region2: #{tpu_custom_call.1} parent=1 // loop_pre_header
      _
    $region3: #{tpu_custom_call.1} parent=1 // loop_header
      %s12 = sphi 0, %s16
      %p13 = scmp.ge.s32.totalorder %s12, 4
      %s19 = sphi 0, %s31
      %s20 = sphi 0, %s27
      %s21 = sphi 0, %s19
      %s22 = sphi 0, %s20
      %s23 = sphi 0, %s21
      %s24 = sphi 0, %s22
      %s36 = sphi 0, %s38
      %s39 = sphi 0, %s36
      %s40 = sphi 0, %s39
      %s56 = sphi 0, %s40
      %s60 = sphi 0, %s60
      %s62 = sphi 0, %s60
      %s63 = sphi 0, %s62
      %s77 = sphi 0, %s63
      %s81 = sphi 0, %s81
      %s83 = sphi 0, %s81
      %s84 = sphi 0, %s83
      %s98 = sphi 0, %s84
      %s106 = sphi 0, %s108
      %s109 = sphi 0, %s106
      %s110 = sphi 0, %s109
      %s126 = sphi 0, %s110
    $region4: #{tpu_custom_call.1} parent=1 // loop_header_branch
      %15 = sbr.rel (%p13) target = $region8
    $region5: #{tpu_custom_call.1} parent=1 // loop_body
      %s17 = ssub.s32 %s12, 1
      %s18 = ssub.s32 %s12, 2
      %s25 = sadd.s32 1, %s20
      %p26 = scmp.ge.s32.totalorder %s25, 1
      %s27 = scalar_select %p26, 0, %s25
      %s28 = sadd.s32 1, %s19
      %s29 = scalar_select %p26, %s28, %s19
      %p30 = scmp.ge.s32.totalorder %s29, 2
      %s31 = scalar_select %p30, 0, %s29
      %s32 = ssub.s32 %s19, %s31
      %s33 = ssub.s32 %s20, %s27
      %s34 = sor.u32 %s32, %s33
      %p35 = scmp.eq.s32.totalorder %s34, 0
      %s37 = sadd.s32 %s36, 1
      %s38 = scalar_select %p35, %s36, %s37
      %p41 = pneg %p35
      %p42 = scmp.eq.s32.totalorder %s12, 1
      %p43 = por %p41, %p42
      %p44 = scmp.ne.s32.totalorder %s36, %s39
      %p45 = scmp.eq.s32.totalorder %s12, 0
      %p46 = por %p44, %p45
      %p47 = scmp.ne.s32.totalorder %s36, %s39
      %p48 = scmp.eq.s32.totalorder %s17, 1
      %p49 = por %p47, %p48
      %p50 = scmp.ne.s32.totalorder %s39, %s40
      %p51 = scmp.eq.s32.totalorder %s17, 0
      %p52 = por %p50, %p51
      %p53 = scmp.ne.s32.totalorder %s39, %s40
      %p54 = scmp.eq.s32.totalorder %s18, 1
      %p55 = por %p53, %p54
      %p57 = scmp.ne.s32.totalorder %s40, %s56
      %p58 = scmp.eq.s32.totalorder %s18, 0
      %p59 = por %p57, %p58
      %s61 = sadd.s32 %s60, 1
      %p64 = scmp.eq.s32.totalorder %s12, 1
      %p65 = scmp.ne.s32.totalorder %s60, %s62
      %p66 = scmp.eq.s32.totalorder %s12, 0
      %p67 = por %p65, %p66
      %p68 = scmp.ne.s32.totalorder %s60, %s62
      %p69 = scmp.eq.s32.totalorder %s17, 1
      %p70 = por %p68, %p69
      %p71 = scmp.ne.s32.totalorder %s62, %s63
      %p72 = scmp.eq.s32.totalorder %s17, 0
      %p73 = por %p71, %p72
      %p74 = scmp.ne.s32.totalorder %s62, %s63
      %p75 = scmp.eq.s32.totalorder %s18, 1
      %p76 = por %p74, %p75
      %p78 = scmp.ne.s32.totalorder %s63, %s77
      %p79 = scmp.eq.s32.totalorder %s18, 0
      %p80 = por %p78, %p79
      %s82 = sadd.s32 %s81, 1
      %p85 = scmp.eq.s32.totalorder %s12, 1
      %p86 = scmp.ne.s32.totalorder %s81, %s83
      %p87 = scmp.eq.s32.totalorder %s12, 0
      %p88 = por %p86, %p87
      %p89 = scmp.ne.s32.totalorder %s81, %s83
      %p90 = scmp.eq.s32.totalorder %s17, 1
      %p91 = por %p89, %p90
      %p92 = scmp.ne.s32.totalorder %s83, %s84
      %p93 = scmp.eq.s32.totalorder %s17, 0
      %p94 = por %p92, %p93
      %p95 = scmp.ne.s32.totalorder %s83, %s84
      %p96 = scmp.eq.s32.totalorder %s18, 1
      %p97 = por %p95, %p96
      %p99 = scmp.ne.s32.totalorder %s84, %s98
      %p100 = scmp.eq.s32.totalorder %s18, 0
      %p101 = por %p99, %p100
      %s102 = ssub.s32 %s19, %s31
      %s103 = ssub.s32 %s20, %s27
      %s104 = sor.u32 %s102, %s103
      %p105 = scmp.eq.s32.totalorder %s104, 0
      %s107 = sadd.s32 %s106, 1
      %s108 = scalar_select %p105, %s106, %s107
      %p111 = pneg %p105
      %p112 = scmp.eq.s32.totalorder %s12, 1
      %p113 = por %p111, %p112
      %p114 = scmp.ne.s32.totalorder %s106, %s109
      %p115 = scmp.eq.s32.totalorder %s12, 0
      %p116 = por %p114, %p115
      %p117 = scmp.ne.s32.totalorder %s106, %s109
      %p118 = scmp.eq.s32.totalorder %s17, 1
      %p119 = por %p117, %p118
      %p120 = scmp.ne.s32.totalorder %s109, %s110
      %p121 = scmp.eq.s32.totalorder %s17, 0
      %p122 = por %p120, %p121
      %p123 = scmp.ne.s32.totalorder %s109, %s110
      %p124 = scmp.eq.s32.totalorder %s18, 1
      %p125 = por %p123, %p124
      %p127 = scmp.ne.s32.totalorder %s110, %s126
      %p128 = scmp.eq.s32.totalorder %s18, 0
      %p129 = por %p127, %p128
      %p130 = scmp.le.s32.totalorder 1, %s12
      %p131 = scmp.lt.s32.totalorder %s12, 3
      %p132 = pnand %p130, %p131
      %p133 = pneg %p132
      // Predicated region
      $region9: #{tpu_custom_call.1} parent=5 // pred_check
        _
      $region10: #{tpu_custom_call.1} parent=5 // pred_check_branch
        %135 = sbr.rel (%p132) target = $region12
      $region11: #{tpu_custom_call.1} parent=5 // pred_region
        %s136 = ssub.s32 %s12, 1
        // Predicated region
        $region13: #{tpu_custom_call.1} parent=11 // pred_check
          %p137 = pneg %p73
        $region14: #{tpu_custom_call.1} parent=11 // pred_check_branch
          %139 = sbr.rel (%p137) target = $region16
        $region15: #{tpu_custom_call.1} parent=11 // pred_region
          _
        $region16: #{tpu_custom_call.1} parent=11 // pred_fallthru
          _
        // Predicated region
        $region17: #{tpu_custom_call.1} parent=11 // pred_check
          %p140 = pneg %p94
        $region18: #{tpu_custom_call.1} parent=11 // pred_check_branch
          %142 = sbr.rel (%p140) target = $region20
        $region19: #{tpu_custom_call.1} parent=11 // pred_region
          _
        $region20: #{tpu_custom_call.1} parent=11 // pred_fallthru
          _
      $region12: #{tpu_custom_call.1} parent=5 // pred_fallthru
        _
      %p143 = scmp.lt.s32.totalorder %s12, 2
      // Predicated region
      $region21: #{tpu_custom_call.1} parent=5 // pred_check
        %p144 = pneg %p143
      $region22: #{tpu_custom_call.1} parent=5 // pred_check_branch
        %146 = sbr.rel (%p144) target = $region24
      $region23: #{tpu_custom_call.1} parent=5 // pred_region
        // Predicated region
        $region25: #{tpu_custom_call.1} parent=23 // pred_check
          %p147 = pneg %p46
        $region26: #{tpu_custom_call.1} parent=23 // pred_check_branch
          %149 = sbr.rel (%p147) target = $region28
        $region27: #{tpu_custom_call.1} parent=23 // pred_region
          %p150 = scmp.lt.s32.totalorder %s19, 1
          %s151 = scalar_select %p150, %s19, 1
          %p152 = scmp.lt.s32.totalorder %s20, 0
          %s153 = scalar_select %p152, %s20, 0
          %s154 = smul.addr %s151, 4
          %s155 = sadd.s32 %s153, %s154
          %s156 = smul.addr %s155, 8
          %s157 = scalar_lea.vmem %s0, %s156
        $region28: #{tpu_custom_call.1} parent=23 // pred_fallthru
          _
      $region24: #{tpu_custom_call.1} parent=5 // pred_fallthru
        _
      %p158 = scmp.le.s32.totalorder 1, %s12
      %p159 = scmp.lt.s32.totalorder %s12, 3
      %p160 = pnand %p158, %p159
      %p161 = pneg %p160
      // Predicated region
      $region29: #{tpu_custom_call.1} parent=5 // pred_check
        _
      $region30: #{tpu_custom_call.1} parent=5 // pred_check_branch
        %163 = sbr.rel (%p160) target = $region32
      $region31: #{tpu_custom_call.1} parent=5 // pred_region
        %s164 = ssub.s32 %s12, 1
        %p165 = scmp.lt.s32.totalorder %s21, 1
        %s166 = scalar_select %p165, %s21, 1
        %p167 = scmp.lt.s32.totalorder %s22, 0
        %s168 = scalar_select %p167, %s22, 0
        %s169 = smul.addr %s166, 4
        %s170 = sadd.s32 %s168, %s169
        %s171 = smul.addr %s170, 8
        %s172 = scalar_lea.vmem %s0, %s171
        %p173 = pneg %p52
        %p174 = pneg %p49
        %p175 = pneg %p73
        %p176 = pneg %p70
        %p177 = pneg %p94
        %p178 = pneg %p91
        %p179 = pneg %p122
        %p180 = pneg %p119
        %s181 = sand.u32 %s109, 1
        %s182 = scalar_lea.sflag [#allocation3], %s181
        %s183 = sand.u32 %s109, 1
        %s184 = smul.addr %s183, 64
        %s185 = scalar_lea.vmem [#allocation2], %s184
        %p186 = scmp.lt.s32.totalorder %s21, 1
        %s187 = scalar_select %p186, %s21, 1
        %p188 = scmp.lt.s32.totalorder %s22, 0
        %s189 = scalar_select %p188, %s22, 0
        %s190 = smul.addr %s187, 4
        %s191 = sadd.s32 %s189, %s190
        %s192 = smul.addr %s191, 8
        %s193 = scalar_lea.vmem %s0, %s192
        %v194 = vld [vmem:[%s1] sm:$0xff]
        %v195 = vld [vmem:[%s1 + $0x8] sm:$0xff]
        %v196 = vld [vmem:[%s1 + $0x10] sm:$0xff]
        %v197 = vld [vmem:[%s1 + $0x18] sm:$0xff]
        %v198 = vld [vmem:[%s1 + $0x20] sm:$0xff]
        %v199 = vld [vmem:[%s1 + $0x28] sm:$0xff]
        %v200 = vld [vmem:[%s1 + $0x30] sm:$0xff]
        %v201 = vld [vmem:[%s1 + $0x38] sm:$0xff]
        %v202 = vld [vmem:[%s193] sm:$0xff]
        %v203 = vld [vmem:[%s193 + $0x8] sm:$0xff]
        %v204 = vld [vmem:[%s193 + $0x10] sm:$0xff]
        %v205 = vld [vmem:[%s193 + $0x18] sm:$0xff]
        %v206 = vld [vmem:[%s2] sm:$0xff]
        %v207 = vld [vmem:[%s2 + $0x8] sm:$0xff]
        %v208 = vld [vmem:[%s2 + $0x10] sm:$0xff]
        %v209 = vld [vmem:[%s2 + $0x18] sm:$0xff]
        %v210 = vld [vmem:[%s2 + $0x20] sm:$0xff]
        %v211 = vld [vmem:[%s2 + $0x28] sm:$0xff]
        %v212 = vld [vmem:[%s2 + $0x30] sm:$0xff]
        %v213 = vld [vmem:[%s2 + $0x38] sm:$0xff]
        %215 = vset.pattern.permute.xlu0 0
        %216 = vperm.xlu0 %215, %v206
        %v217 = vpop.permute.xlu0 %216
        %220 = vset.pattern.permute.xlu0 0
        %221 = vperm.xlu0 %220, %v207
        %v222 = vpop.permute.xlu0 %221
        %225 = vset.pattern.permute.xlu0 0
        %226 = vperm.xlu0 %225, %v208
        %v227 = vpop.permute.xlu0 %226
        %230 = vset.pattern.permute.xlu0 0
        %231 = vperm.xlu0 %230, %v209
        %v232 = vpop.permute.xlu0 %231
        %235 = vset.pattern.permute.xlu0 0
        %236 = vperm.xlu0 %235, %v210
        %v237 = vpop.permute.xlu0 %236
        %240 = vset.pattern.permute.xlu0 0
        %241 = vperm.xlu0 %240, %v211
        %v242 = vpop.permute.xlu0 %241
        %245 = vset.pattern.permute.xlu0 0
        %246 = vperm.xlu0 %245, %v212
        %v247 = vpop.permute.xlu0 %246
        %250 = vset.pattern.permute.xlu0 0
        %251 = vperm.xlu0 %250, %v213
        %v252 = vpop.permute.xlu0 %251
        %vm254 = vcmask 261120
        %v256 = vsel %vm254, %v194, 0
        %v259 = vsel %vm254, %v195, 0
        %v262 = vsel %vm254, %v196, 0
        %v265 = vsel %vm254, %v197, 0
        %v268 = vsel %vm254, %v198, 0
        %v271 = vsel %vm254, %v199, 0
        %v274 = vsel %vm254, %v200, 0
        %v277 = vsel %vm254, %v201, 0
        %279 = vmatprep.subr.mxu0 0.0
        %280 = vmatpush1.msra.mxu0 %v202
        %281 = vmatprep.subr.mxu0 0.0
        %282 = vmatpush1.msra.mxu0 %v203
        %283 = vmatprep.subr.mxu0 0.0
        %284 = vmatpush1.msra.mxu0 %v204
        %285 = vmatprep.subr.mxu0 0.0
        %286 = vmatpush1.msra.mxu0 %v205
        %287 = vmatprep.subr.mxu0 0.0
        %288 = vmatpush1.msra.mxu0 0.0
        %289 = vmatprep.subr.mxu0 0.0
        %290 = vmatpush1.msra.mxu0 0.0
        %291 = vmatprep.subr.mxu0 0.0
        %292 = vmatpush1.msra.mxu0 0.0
        %293 = vmatprep.subr.mxu0 0.0
        %294 = vmatpush1.msra.mxu0 0.0
        %295 = vmatprep.subr.mxu0 0.0
        %296 = vmatpush1.msra.mxu0 0.0
        %297 = vmatprep.subr.mxu0 0.0
        %298 = vmatpush1.msra.mxu0 0.0
        %299 = vmatprep.subr.mxu0 0.0
        %300 = vmatpush1.msra.mxu0 0.0
        %301 = vmatprep.subr.mxu0 0.0
        %302 = vmatpush1.msra.mxu0 0.0
        %303 = vmatprep.subr.mxu0 0.0
        %304 = vmatpush1.msra.mxu0 0.0
        %305 = vmatprep.subr.mxu0 0.0
        %306 = vmatpush1.msra.mxu0 0.0
        %307 = vmatprep.subr.mxu0 0.0
        %308 = vmatpush1.msra.mxu0 0.0
        %309 = vmatprep.subr.mxu0 0.0
        %310 = vmatpush1.msra.mxu0 0.0
        %311 = vmatprep.subr.mxu0 0.0
        %312 = vmatpush1.msra.mxu0 0.0
        %313 = vmatprep.subr.mxu0 0.0
        %314 = vmatpush1.msra.mxu0 0.0
        %315 = vmatprep.subr.mxu0 0.0
        %316 = vmatpush1.msra.mxu0 0.0
        %317 = vmatprep.subr.mxu0 0.0
        %318 = vmatpush1.msra.mxu0 0.0
        %319 = vmatprep.subr.mxu0 0.0
        %320 = vmatpush1.msra.mxu0 0.0
        %321 = vmatprep.subr.mxu0 0.0
        %322 = vmatpush1.msra.mxu0 0.0
        %323 = vmatprep.subr.mxu0 0.0
        %324 = vmatpush1.msra.mxu0 0.0
        %325 = vmatprep.subr.mxu0 0.0
        %326 = vmatpush1.msra.mxu0 0.0
        %327 = vmatprep.subr.mxu0 0.0
        %328 = vmatpush1.msra.mxu0 0.0
        %329 = vmatprep.subr.mxu0 0.0
        %330 = vmatpush1.msra.mxu0 0.0
        %331 = vmatprep.subr.mxu0 0.0
        %332 = vmatpush1.msra.mxu0 0.0
        %333 = vmatprep.subr.mxu0 0.0
        %334 = vmatpush1.msra.mxu0 0.0
        %335 = vmatprep.subr.mxu0 0.0
        %336 = vmatpush1.msra.mxu0 0.0
        %337 = vmatprep.subr.mxu0 0.0
        %338 = vmatpush1.msra.mxu0 0.0
        %339 = vmatprep.subr.mxu0 0.0
        %340 = vmatpush1.msra.mxu0 0.0
        %341 = vmatprep.subr.mxu0 0.0
        %342 = vmatpush1.msra.mxu0 0.0
        %343 = vmatprep.mubr.f32.mxu0 0.0
        %344 = vmatmul.mubr.f32.gmra.mrb[0].mxu0 %v256
        %v345 = vpop.f32.mrb[0].mxu0
        %v346 = vadd.f32 %v217, %v345
        %v347 = vpop.f32.mrb[0].mxu0
        %348 = vmatprep.mubr.f32.mxu0 0.0
        %349 = vmatmul.mubr.f32.gmra.mrb[0].mxu0 %v259
        %v350 = vpop.f32.mrb[0].mxu0
        %v351 = vadd.f32 %v222, %v350
        %v352 = vpop.f32.mrb[0].mxu0
        %353 = vmatprep.mubr.f32.mxu0 0.0
        %354 = vmatmul.mubr.f32.gmra.mrb[0].mxu0 %v262
        %v355 = vpop.f32.mrb[0].mxu0
        %v356 = vadd.f32 %v227, %v355
        %v357 = vpop.f32.mrb[0].mxu0
        %358 = vmatprep.mubr.f32.mxu0 0.0
        %359 = vmatmul.mubr.f32.gmra.mrb[0].mxu0 %v265
        %v360 = vpop.f32.mrb[0].mxu0
        %v361 = vadd.f32 %v232, %v360
        %v362 = vpop.f32.mrb[0].mxu0
        %363 = vmatprep.mubr.f32.mxu0 0.0
        %364 = vmatmul.mubr.f32.gmra.mrb[0].mxu0 %v268
        %v365 = vpop.f32.mrb[0].mxu0
        %v366 = vadd.f32 %v237, %v365
        %v367 = vpop.f32.mrb[0].mxu0
        %368 = vmatprep.mubr.f32.mxu0 0.0
        %369 = vmatmul.mubr.f32.gmra.mrb[0].mxu0 %v271
        %v370 = vpop.f32.mrb[0].mxu0
        %v371 = vadd.f32 %v242, %v370
        %v372 = vpop.f32.mrb[0].mxu0
        %373 = vmatprep.mubr.f32.mxu0 0.0
        %374 = vmatmul.mubr.f32.gmra.mrb[0].mxu0 %v274
        %v375 = vpop.f32.mrb[0].mxu0
        %v376 = vadd.f32 %v247, %v375
        %v377 = vpop.f32.mrb[0].mxu0
        %378 = vmatprep.mubr.f32.mxu0 0.0
        %379 = vmatmul.mubr.f32.gmra.mrb[0].mxu0 %v277
        %v380 = vpop.f32.mrb[0].mxu0
        %v381 = vadd.f32 %v252, %v380
        %v382 = vpop.f32.mrb[0].mxu0
        %383 = vdwg.mxu0
        %vm384 = vcmask 523264
        %385 = vst.msk [vmem:[%s185] sm:$0xff] %vm384, %v346
        %386 = vst.msk [vmem:[%s185 + $0x8] sm:$0xff] %vm384, %v351
        %387 = vst.msk [vmem:[%s185 + $0x10] sm:$0xff] %vm384, %v356
        %388 = vst.msk [vmem:[%s185 + $0x18] sm:$0xff] %vm384, %v361
        %389 = vst.msk [vmem:[%s185 + $0x20] sm:$0xff] %vm384, %v366
        %390 = vst.msk [vmem:[%s185 + $0x28] sm:$0xff] %vm384, %v371
        %391 = vst.msk [vmem:[%s185 + $0x30] sm:$0xff] %vm384, %v376
        %392 = vst.msk [vmem:[%s185 + $0x38] sm:$0xff] %vm384, %v381
        %s393 = sand.u32 %s109, 1
        %s394 = scalar_lea.sflag [#allocation3], %s393
        %s395 = sand.u32 %s109, 1
        %s396 = smul.addr %s395, 64
        %s397 = scalar_lea.vmem [#allocation2], %s396
        // Predicated region
        $region33: #{tpu_custom_call.1} parent=31 // pred_check
          %p398 = pneg %p119
        $region34: #{tpu_custom_call.1} parent=31 // pred_check_branch
          %400 = sbr.rel (%p398) target = $region36
        $region35: #{tpu_custom_call.1} parent=31 // pred_region
          %s402 = ssub.s32 1024, 1024
          %403 = vsyncadd %s394, %s402
          %s404 = smul.addr %s21, 8
          %s405 = sadd.s32 %s22, %s404
          %s406 = smul.addr %s405, 128
          %s407 = scalar_lea.hbm %s3, %s406
          %s408 = sshll.u32 %s397, 4
          %s409 = int_to_ptr.vmem [resolvable:$true] %s408
          %414 = dma.vmem_to_hbm [thread:$0]  %s409, 1024, %s407, %s394, 128, 128, 8
        $region36: #{tpu_custom_call.1} parent=31 // pred_fallthru
          _
      $region32: #{tpu_custom_call.1} parent=5 // pred_fallthru
        _
      %p415 = scmp.le.s32.totalorder 2, %s12
      // Predicated region
      $region37: #{tpu_custom_call.1} parent=5 // pred_check
        %p416 = pneg %p415
      $region38: #{tpu_custom_call.1} parent=5 // pred_check_branch
        %418 = sbr.rel (%p416) target = $region40
      $region39: #{tpu_custom_call.1} parent=5 // pred_region
        %s419 = ssub.s32 %s12, 2
        // Predicated region
        $region41: #{tpu_custom_call.1} parent=39 // pred_check
          %p420 = pneg %p125
        $region42: #{tpu_custom_call.1} parent=39 // pred_check_branch
          %422 = sbr.rel (%p420) target = $region44
        $region43: #{tpu_custom_call.1} parent=39 // pred_region
          %s423 = sand.u32 %s110, 1
          %s424 = scalar_lea.sflag [#allocation3], %s423
          %s425 = sand.u32 %s110, 1
          %s426 = smul.addr %s425, 64
          %s427 = scalar_lea.vmem [#allocation2], %s426
          %428 = dma.done %s424, 1024
        $region44: #{tpu_custom_call.1} parent=39 // pred_fallthru
          _
      $region40: #{tpu_custom_call.1} parent=5 // pred_fallthru
        _
    $region6: #{tpu_custom_call.1} parent=1 // loop_footer
      %s16 = sadd.s32 1, %s12
    $region7: #{tpu_custom_call.1} parent=1 // loop_footer_branch
      %11 = sbr.rel target = $region3
    $region8: #{tpu_custom_call.1} parent=1 // loop_exit
      _
    %429 = vsyncpa [#allocation3], 1
    %s430 = scalar_lea.sflag [#allocation3], 1
    %431 = vsyncpa %s430, 1

</llo_original>
